<compile_context>
chip_gen: v7x
topology: tpu7x:2x2x1
jax: 0.10.0
libtpu: 0.0.40
codegen_flags: <defaults>
</compile_context>

<pallas_src>
import jax
import jax.numpy as jnp
from jax.experimental import pallas as pl
from jax.experimental.pallas import tpu as pltpu

HP = 128       # padded hidden/output lane width (lane-dense stores)
H_REAL = 100   # true fc1/fc2 width


def _round_up(n, m):
    return ((n + m - 1) // m) * m


def _cdiv(a, b):
    return (a + b - 1) // b


# ---------------------------------------------------------------------------
# Hardware-aware sizing
# ---------------------------------------------------------------------------
def _vmem_capacity_bytes():
    """Per-core VMEM capacity; conservative fallback = v7x's 64 MiB."""
    try:
        return int(pltpu.get_tpu_info().vmem_capacity_bytes)
    except Exception:
        return 64 * 1024 * 1024


def _pick_tiling(B, K, out_itemsize):
    """Pick batch tile TB, padded batch Bp, and a scoped-VMEM limit.

    Per-step VMEM (bytes):
      x   double-buffered : 2 * TB * K * 2            (bf16)
      out double-buffered : 2 * TB * HP * out_itemsize
      weights (resident)  : K*HP*2 + HP*HP*2 + 2*HP*4 (x2 budgeted, in case
                            single-buffering is unavailable)
    """
    capacity = _vmem_capacity_bytes()
    # ~75% of physical, capped at 100 MiB: ~48 MiB on v7x (64 MiB/TC),
    # ~96-100 MiB on v5e/v6e (128 MiB).
    vmem_limit = int(min(capacity * 3 // 4, 100 * 1024 * 1024))
    weights_bytes = 2 * (K * HP * 2 + HP * HP * 2 + 2 * HP * 4)
    margin = 4 * 1024 * 1024                     # compiler-internal scratch
    budget = max(vmem_limit - weights_bytes - margin, 1)
    per_row = 4 * K + 2 * HP * out_itemsize      # double-buffered x + out
    tb_cap = max(16, (budget // per_row) // 16 * 16)
    tb_cap = min(tb_cap, 4096)                   # diminishing returns beyond this

    B16 = _round_up(max(B, 1), 16)
    # >=2 grid steps when the batch allows it, so v7x's 2 TensorCores both
    # get work via dimension_semantics=("parallel",) (no-op on v5e/v6e).
    min_steps = 2 if B16 >= 32 else 1
    n_steps = max(min_steps, _cdiv(B16, tb_cap))
    TB = _round_up(_cdiv(B16, n_steps), 16)
    Bp = _round_up(B16, TB)
    return TB, Bp, vmem_limit


def _resident_spec(shape):
    """Constant-index (VMEM-resident) BlockSpec; single-buffered if supported."""
    idx = lambda i: (0,) * len(shape)
    if hasattr(pl, "Buffered"):
        try:
            return pl.BlockSpec(shape, idx, pipeline_mode=pl.Buffered(1))
        except TypeError:
            pass
    return pl.BlockSpec(shape, idx)


# ---------------------------------------------------------------------------
# Kernel
# ---------------------------------------------------------------------------
def _mlp_kernel(x_ref, w1_ref, b1_ref, w2_ref, b2_ref, o_ref):
    # hidden = tanh(x @ W1 + b1): bf16 operands on the MXU, f32 accumulate.
    h = jnp.dot(x_ref[...], w1_ref[...], preferred_element_type=jnp.float32)
    h = jnp.tanh(h + b1_ref[...])
    # out = hidden @ W2 + b2 (no activation, matching the PyTorch forward()).
    o = jnp.dot(h.astype(w2_ref.dtype), w2_ref[...],
                preferred_element_type=jnp.float32)
    o_ref[...] = (o + b2_ref[...]).astype(o_ref.dtype)


# ---------------------------------------------------------------------------
# Parameter preparation (hoisted out of the per-call forward path)
# ---------------------------------------------------------------------------
def prepare_params(w1, b1, w2, b2, *, compute_dtype=jnp.bfloat16):
    """Pad fc1/fc2 params 100 -> 128 lanes and cast weights ONCE.
    Zero padding is exact: padded hidden lanes are tanh(0)=0 and padded W2
    rows are zero, so lanes 100:127 contribute nothing before being sliced.
    (On v5e, pass compute_dtype=jnp.float32 for exact f32 parity — near-zero
    perf cost in the memory-bound regime.)"""
    K = w1.shape[0]
    w1p = jnp.zeros((K, HP), compute_dtype).at[:, :H_REAL].set(
        w1.astype(compute_dtype))
    b1p = jnp.zeros((1, HP), jnp.float32).at[:, :H_REAL].set(
        b1.reshape(1, -1).astype(jnp.float32))
    w2p = jnp.zeros((HP, HP), compute_dtype).at[:H_REAL, :H_REAL].set(
        w2.astype(compute_dtype))
    b2p = jnp.zeros((1, HP), jnp.float32).at[:, :H_REAL].set(
        b2.reshape(1, -1).astype(jnp.float32))
    return w1p, b1p, w2p, b2p


# ---------------------------------------------------------------------------
# Forward
# ---------------------------------------------------------------------------
def nn_classifier_forward(x, w1p, b1p, w2p, b2p, *, out_dtype=jnp.float32):
    """x: (B, input_size); params pre-padded by prepare_params().
    Returns (B, 100) in out_dtype (pass jnp.bfloat16 to halve output HBM
    traffic if the consumer accepts it)."""
    B, K = x.shape
    assert w1p.shape == (K, HP) and w2p.shape == (HP, HP)
    compute_dtype = w1p.dtype

    out_itemsize = jnp.dtype(out_dtype).itemsize
    TB, Bp, vmem_limit = _pick_tiling(B, K, out_itemsize)

    xb = x.astype(compute_dtype)
    if Bp != B:
        xb = jnp.pad(xb, ((0, Bp - B), (0, 0)))
    grid = (Bp // TB,)

    flops = 2 * Bp * (K * HP + HP * HP)
    bytes_accessed = (Bp * K * jnp.dtype(compute_dtype).itemsize   # x in
                      + Bp * HP * out_itemsize                      # out
                      + (w1p.size + w2p.size) * jnp.dtype(compute_dtype).itemsize
                      + (b1p.size + b2p.size) * 4)

    out = pl.pallas_call(
        _mlp_kernel,
        out_shape=jax.ShapeDtypeStruct((Bp, HP), out_dtype),
        grid=grid,
        in_specs=[
            pl.BlockSpec((TB, K), lambda i: (i, 0)),   # x: streamed per tile
            _resident_spec((K, HP)),                   # W1: VMEM-resident
            _resident_spec((1, HP)),                   # b1
            _resident_spec((HP, HP)),                  # W2
            _resident_spec((1, HP)),                   # b2
        ],
        out_specs=pl.BlockSpec((TB, HP), lambda i: (i, 0)),
        compiler_params=pltpu.CompilerParams(
            dimension_semantics=("parallel",),
            vmem_limit_bytes=vmem_limit),
        cost_estimate=pl.CostEstimate(
            flops=flops, transcendentals=Bp * HP,
            bytes_accessed=bytes_accessed),
    )(xb, w1p, b1p, w2p, b2p)

    # slice away batch padding and the 28 zero-padded output lanes
    return out[:B, :H_REAL]


def init_params(key, input_size, h1=100, h2=100):
    """Deterministic init mimicking PyTorch Linear default (U[-1/sqrt(fan_in), +])."""
    k1, k2, k3, k4 = jax.random.split(key, 4)
    bnd1 = 1.0 / jnp.sqrt(jnp.float32(input_size))
    bnd2 = 1.0 / jnp.sqrt(jnp.float32(h1))
    # stored as (in, out) == transpose of PyTorch's (out, in) weight layout
    w1 = jax.random.uniform(k1, (input_size, h1), jnp.float32, -bnd1, bnd1)
    b1 = jax.random.uniform(k2, (h1,), jnp.float32, -bnd1, bnd1)
    w2 = jax.random.uniform(k3, (h1, h2), jnp.float32, -bnd2, bnd2)
    b2 = jax.random.uniform(k4, (h2,), jnp.float32, -bnd2, bnd2)
    return w1, b1, w2, b2


def _reference_bf16(x, w1, b1, w2, b2):
    """Same numerics as the kernel (bf16 MXU operands, f32 accumulation)."""
    xb = x.astype(jnp.bfloat16)
    h = jnp.tanh(jnp.dot(xb, w1.astype(jnp.bfloat16),
                         preferred_element_type=jnp.float32) + b1.reshape(1, -1))
    return jnp.dot(h.astype(jnp.bfloat16), w2.astype(jnp.bfloat16),
                   preferred_element_type=jnp.float32) + b2.reshape(1, -1)


if __name__ == "__main__":
    key = jax.random.PRNGKey(0)
    kx, kx2, kp = jax.random.split(key, 3)

    input_size = 32
    w1, b1, w2, b2 = init_params(kp, input_size)
    # pad / cast weights ONCE (hoisted out of the forward path)
    params = prepare_params(w1, b1, w2, b2)

    # --- small batch (single grid step) --------------------------------------
    x = jax.random.normal(kx, (8, input_size), jnp.float32)
    out = jax.block_until_ready(nn_classifier_forward(x, *params))
    assert out.shape == (8, 100), out.shape
    ref = _reference_bf16(x, w1, b1, w2, b2)
    assert jnp.allclose(out, ref, atol=2e-3, rtol=2e-3), "mismatch vs bf16 reference"
    ref_f32 = jnp.tanh(x @ w1 + b1.reshape(1, -1)) @ w2 + b2.reshape(1, -1)
    assert jnp.allclose(out, ref_f32, atol=5e-2, rtol=5e-2), "mismatch vs f32 reference"

    # --- batch that exercises multi-step grid + batch padding ----------------
    x2 = jax.random.normal(kx2, (40, input_size), jnp.float32)
    out2 = jax.block_until_ready(nn_classifier_forward(x2, *params))
    assert out2.shape == (40, 100), out2.shape
    ref2 = _reference_bf16(x2, w1, b1, w2, b2)
    assert jnp.allclose(out2, ref2, atol=2e-3, rtol=2e-3), "mismatch (multi-step grid)"

    print("KERNEL_OK")
</pallas_src>

<mosaic_0001>
module attributes {stable_mosaic.version = 11 : i64} {
  func.func @_mlp_kernel(%arg0: i32, %arg1: memref<16x32xbf16, #tpu.memory_space<vmem>>, %arg2: memref<32x128xbf16, #tpu.memory_space<vmem>>, %arg3: memref<1x128xf32, #tpu.memory_space<vmem>>, %arg4: memref<128x128xbf16, #tpu.memory_space<vmem>>, %arg5: memref<1x128xf32, #tpu.memory_space<vmem>>, %arg6: memref<16x128xf32, #tpu.memory_space<vmem>>) attributes {dimension_semantics = [#tpu.dimension_semantics<parallel>], iteration_bounds = array<i64: 1>, scalar_prefetch = 0 : i64, scratch_operands = 0 : i64, tpu.core_type = #tpu.core_type<tc>, window_params = [{transform_indices = @transform_0, window_bounds = array<i64: 16, 32>}, {pipeline_mode = #tpu.pipeline_mode<synchronous>, transform_indices = @transform_1, window_bounds = array<i64: 32, 128>}, {pipeline_mode = #tpu.pipeline_mode<synchronous>, transform_indices = @transform_2, window_bounds = array<i64: 1, 128>}, {pipeline_mode = #tpu.pipeline_mode<synchronous>, transform_indices = @transform_3, window_bounds = array<i64: 128, 128>}, {pipeline_mode = #tpu.pipeline_mode<synchronous>, transform_indices = @transform_4, window_bounds = array<i64: 1, 128>}, {transform_indices = @transform_5, window_bounds = array<i64: 16, 128>}]} {
    %c0 = arith.constant 0 : index
    %c0_0 = arith.constant 0 : index
    %0 = vector.load %arg1[%c0, %c0_0] : memref<16x32xbf16, #tpu.memory_space<vmem>>, vector<16x32xbf16>
    %c0_1 = arith.constant 0 : index
    %c0_2 = arith.constant 0 : index
    %1 = vector.load %arg2[%c0_1, %c0_2] : memref<32x128xbf16, #tpu.memory_space<vmem>>, vector<32x128xbf16>
    %cst = arith.constant dense<0.000000e+00> : vector<16x128xf32>
    %2 = tpu.matmul %0, %1, %cst {dimension_numbers = #tpu.dot_dimension_numbers<[1], [0], [0], [1], [0, 0, 1, 1], [], []>} : vector<16x32xbf16>, vector<32x128xbf16>, vector<16x128xf32> -> vector<16x128xf32>
    %c0_3 = arith.constant 0 : index
    %c0_4 = arith.constant 0 : index
    %3 = vector.load %arg3[%c0_3, %c0_4] : memref<1x128xf32, #tpu.memory_space<vmem>>, vector<1x128xf32>
    %4 = vector.broadcast %3 : vector<1x128xf32> to vector<16x128xf32>
    %5 = arith.addf %2, %4 : vector<16x128xf32>
    %6 = math.tanh %5 : vector<16x128xf32>
    %7 = arith.truncf %6 : vector<16x128xf32> to vector<16x128xbf16>
    %c0_5 = arith.constant 0 : index
    %c0_6 = arith.constant 0 : index
    %8 = vector.load %arg4[%c0_5, %c0_6] : memref<128x128xbf16, #tpu.memory_space<vmem>>, vector<128x128xbf16>
    %cst_7 = arith.constant dense<0.000000e+00> : vector<16x128xf32>
    %9 = tpu.matmul %7, %8, %cst_7 {dimension_numbers = #tpu.dot_dimension_numbers<[1], [0], [0], [1], [0, 0, 1, 1], [], []>} : vector<16x128xbf16>, vector<128x128xbf16>, vector<16x128xf32> -> vector<16x128xf32>
    %c0_8 = arith.constant 0 : index
    %c0_9 = arith.constant 0 : index
    %10 = vector.load %arg5[%c0_8, %c0_9] : memref<1x128xf32, #tpu.memory_space<vmem>>, vector<1x128xf32>
    %11 = vector.broadcast %10 : vector<1x128xf32> to vector<16x128xf32>
    %12 = arith.addf %9, %11 : vector<16x128xf32>
    %c0_10 = arith.constant 0 : index
    %c0_11 = arith.constant 0 : index
    %13 = vector.load %arg6[%c0_10, %c0_11] : memref<16x128xf32, #tpu.memory_space<vmem>>, vector<16x128xf32>
    tpu.vector_store %arg6[%c0_10, %c0_11], %12 {strides = array<i32>} : memref<16x128xf32, #tpu.memory_space<vmem>>, vector<16x128xf32>,
    return
  }
  func.func @transform_0(%arg0: i32) -> (i32, i32) {
    %c0_i32 = arith.constant 0 : i32
    %c0_i32_0 = arith.constant 0 : i32
    return %arg0, %c0_i32 : i32, i32
  }
  func.func @transform_1(%arg0: i32) -> (i32, i32) {
    %c0_i32 = arith.constant 0 : i32
    %c0_i32_0 = arith.constant 0 : i32
    %c0_i32_1 = arith.constant 0 : i32
    return %c0_i32, %c0_i32_0 : i32, i32
  }
  func.func @transform_2(%arg0: i32) -> (i32, i32) {
    %c0_i32 = arith.constant 0 : i32
    %c0_i32_0 = arith.constant 0 : i32
    %c0_i32_1 = arith.constant 0 : i32
    return %c0_i32, %c0_i32_0 : i32, i32
  }
  func.func @transform_3(%arg0: i32) -> (i32, i32) {
    %c0_i32 = arith.constant 0 : i32
    %c0_i32_0 = arith.constant 0 : i32
    %c0_i32_1 = arith.constant 0 : i32
    return %c0_i32, %c0_i32_0 : i32, i32
  }
  func.func @transform_4(%arg0: i32) -> (i32, i32) {
    %c0_i32 = arith.constant 0 : i32
    %c0_i32_0 = arith.constant 0 : i32
    %c0_i32_1 = arith.constant 0 : i32
    return %c0_i32, %c0_i32_0 : i32, i32
  }
  func.func @transform_5(%arg0: i32) -> (i32, i32) {
    %c0_i32 = arith.constant 0 : i32
    %c0_i32_0 = arith.constant 0 : i32
    return %arg0, %c0_i32 : i32, i32
  }
}

</mosaic_0001>

<llo_original>
// kernel: tpu_custom_call.1
$region0: #{tpu_custom_call.1}
  #allocation0 [shape = 'u32[]', space=smem, size = 0x4, offset = 0x4, fixed_abs, tag = 'smem constant byte address 0x4 - core index']
  #allocation1 [shape = 'u32[144,128]{1,0:T(1,128)}', space=vmem, size = 0x12000, scoped, tag = 'internal scratch']
  %s0 = inlined_call_operand.hbm [shape: bf16[16,32], index: 0, kind: input, shape index: {}]
  %s1 = inlined_call_operand.hbm [shape: bf16[32,128], index: 1, kind: input, shape index: {}]
  %s2 = inlined_call_operand.vmem [shape: f32[1,128], index: 2, kind: input, shape index: {}]
  %s3 = inlined_call_operand.hbm [shape: bf16[128,128], index: 3, kind: input, shape index: {}]
  %s4 = inlined_call_operand.vmem [shape: f32[1,128], index: 4, kind: input, shape index: {}]
  %s5 = inlined_call_operand.hbm [shape: f32[16,128], index: 5, kind: output, shape index: {}]
  %s6 = sld [smem:[#allocation0]]
  $region42: #{tpu_custom_call.1} parent=0
    _
  %s8 = ssub.s32 1, %s6
  %s9 = scalar_select 0, %s8, %s6
  $region1: #{tpu_custom_call.1} parent=0
    #allocation2 [shape = 'u8[4096]{0}', space=vmem, size = 0x1000, scoped, tag = 'input window, operand 0, single buffered']
    #allocation3 [shape = 's32[1]{0}', space=sflag, size = 0x4, scoped, tag = 'scoped memory for tpu_custom_call.1']
    #allocation4 [shape = 's32[1]{0}', space=sflag, size = 0x4, scoped, tag = 'scoped memory for tpu_custom_call.1']
    #allocation5 [shape = 'u8[8192]{0}', space=vmem, size = 0x2000, scoped, tag = 'input window, operand 1, single buffered']
    #allocation6 [shape = 's32[1]{0}', space=sflag, size = 0x4, scoped, tag = 'scoped memory for tpu_custom_call.1']
    #allocation7 [shape = 'u8[32768]{0}', space=vmem, size = 0x8000, scoped, tag = 'input window, operand 3, single buffered']
    #allocation8 [shape = 'u8[8192]{0}', space=vmem, size = 0x2000, scoped, tag = 'output window, operand 0, single buffered']
    %10 = vsyncpa [#allocation3], 0
    %11 = vsyncpa [#allocation6], 0
    %12 = vsyncpa [#allocation4], 0
    // Predicated region
    $region2: #{tpu_custom_call.1} parent=1 // pred_check
      _
    $region3: #{tpu_custom_call.1} parent=1 // pred_check_branch
      %14 = sbr.rel (0) target = $region5
    $region4: #{tpu_custom_call.1} parent=1 // pred_region
      %s16 = ssub.s32 128, 128
      %17 = vsyncadd [#allocation3], %s16
      %s18 = sshll.u32 [#allocation2], 4
      %s19 = int_to_ptr.vmem [resolvable:$true] %s18
      %24 = dma.hbm_to_vmem [thread:$0]  %s0, 128, %s19, [#allocation3], 64, 64, 4
    $region5: #{tpu_custom_call.1} parent=1 // pred_fallthru
      _
    // Predicated region
    $region6: #{tpu_custom_call.1} parent=1 // pred_check
      _
    $region7: #{tpu_custom_call.1} parent=1 // pred_check_branch
      %26 = sbr.rel (0) target = $region9
    $region8: #{tpu_custom_call.1} parent=1 // pred_region
      %s28 = ssub.s32 256, 256
      %29 = vsyncadd [#allocation6], %s28
      %s30 = sshll.u32 [#allocation5], 4
      %s31 = int_to_ptr.vmem [resolvable:$true] %s30
      %36 = dma.hbm_to_vmem [thread:$0]  %s1, 256, %s31, [#allocation6], 64, 64, 4
    $region9: #{tpu_custom_call.1} parent=1 // pred_fallthru
      _
    // Predicated region
    $region10: #{tpu_custom_call.1} parent=1 // pred_check
      _
    $region11: #{tpu_custom_call.1} parent=1 // pred_check_branch
      %38 = sbr.rel (0) target = $region13
    $region12: #{tpu_custom_call.1} parent=1 // pred_region
      _
    $region13: #{tpu_custom_call.1} parent=1 // pred_fallthru
      _
    // Predicated region
    $region14: #{tpu_custom_call.1} parent=1 // pred_check
      _
    $region15: #{tpu_custom_call.1} parent=1 // pred_check_branch
      %40 = sbr.rel (0) target = $region17
    $region16: #{tpu_custom_call.1} parent=1 // pred_region
      %s42 = ssub.s32 1024, 1024
      %43 = vsyncadd [#allocation6], %s42
      %s44 = sshll.u32 [#allocation7], 4
      %s45 = int_to_ptr.vmem [resolvable:$true] %s44
      %50 = dma.hbm_to_vmem [thread:$0]  %s3, 1024, %s45, [#allocation6], 64, 64, 4
    $region17: #{tpu_custom_call.1} parent=1 // pred_fallthru
      _
    // Predicated region
    $region18: #{tpu_custom_call.1} parent=1 // pred_check
      _
    $region19: #{tpu_custom_call.1} parent=1 // pred_check_branch
      %52 = sbr.rel (0) target = $region21
    $region20: #{tpu_custom_call.1} parent=1 // pred_region
      _
    $region21: #{tpu_custom_call.1} parent=1 // pred_fallthru
      _
    // Predicated region
    $region22: #{tpu_custom_call.1} parent=1 // pred_check
      _
    $region23: #{tpu_custom_call.1} parent=1 // pred_check_branch
      %54 = sbr.rel (0) target = $region25
    $region24: #{tpu_custom_call.1} parent=1 // pred_region
      %55 = dma.done [#allocation3], 128
    $region25: #{tpu_custom_call.1} parent=1 // pred_fallthru
      _
    // Predicated region
    $region26: #{tpu_custom_call.1} parent=1 // pred_check
      _
    $region27: #{tpu_custom_call.1} parent=1 // pred_check_branch
      %57 = sbr.rel (0) target = $region29
    $region28: #{tpu_custom_call.1} parent=1 // pred_region
      %58 = dma.done [#allocation6], 256
    $region29: #{tpu_custom_call.1} parent=1 // pred_fallthru
      _
    // Predicated region
    $region30: #{tpu_custom_call.1} parent=1 // pred_check
      _
    $region31: #{tpu_custom_call.1} parent=1 // pred_check_branch
      %60 = sbr.rel (0) target = $region33
    $region32: #{tpu_custom_call.1} parent=1 // pred_region
      %61 = dma.done [#allocation6], 1024
    $region33: #{tpu_custom_call.1} parent=1 // pred_fallthru
      _
    %v63 = vld [vmem:[#allocation2] sm:$0xf]
    %v64 = vld [vmem:[#allocation2 + $0x4] sm:$0xf]
    %v65 = vld [vmem:[#allocation5] sm:$0xf]
    %v66 = vld [vmem:[#allocation5 + $0x4] sm:$0xf]
    %v67 = vld [vmem:[#allocation5 + $0x8] sm:$0xf]
    %v68 = vld [vmem:[#allocation5 + $0xc] sm:$0xf]
    %v69 = vld [vmem:[%s2] sm:$0x1]
    %v71 = vlaneseq
    %v72 = vshrl.u32 %v71, 7
    %v73 = vsub.s32 0, %v72
    %v74 = vrot.slane %v69, %v73
    %v78 = vunpack.c.l.b16 %v63
    %v79 = vunpack.c.l.b16 %v64
    %v80 = vpack.c.b16 %v79, %v78
    %v85 = vunpack.c.l.b16 %v65
    %v86 = vunpack.c.l.b16 %v66
    %v87 = vunpack.c.l.b16 %v67
    %v88 = vunpack.c.l.b16 %v68
    %v89 = vpack.c.b16 %v86, %v85
    %v90 = vpack.c.b16 %v88, %v87
    %vm93 = vcmask 261120
    %v95 = vsel %vm93, %v80, 0
    %97 = vmatprep.subr.bf16.mxu0 0
    %98 = vmatpush1.bf16.msra.mxu0 %v89
    %99 = vmatprep.subr.bf16.mxu0 0
    %100 = vmatpush1.bf16.msra.mxu0 %v90
    %101 = vmatprep.subr.bf16.mxu0 0
    %102 = vmatpush1.bf16.msra.mxu0 0
    %103 = vmatprep.subr.bf16.mxu0 0
    %104 = vmatpush1.bf16.msra.mxu0 0
    %105 = vmatprep.subr.bf16.mxu0 0
    %106 = vmatpush1.bf16.msra.mxu0 0
    %107 = vmatprep.subr.bf16.mxu0 0
    %108 = vmatpush1.bf16.msra.mxu0 0
    %109 = vmatprep.subr.bf16.mxu0 0
    %110 = vmatpush1.bf16.msra.mxu0 0
    %111 = vmatprep.subr.bf16.mxu0 0
    %112 = vmatpush1.bf16.msra.mxu0 0
    %113 = vmatprep.subr.bf16.mxu0 0
    %114 = vmatpush1.bf16.msra.mxu0 0
    %115 = vmatprep.subr.bf16.mxu0 0
    %116 = vmatpush1.bf16.msra.mxu0 0
    %117 = vmatprep.subr.bf16.mxu0 0
    %118 = vmatpush1.bf16.msra.mxu0 0
    %119 = vmatprep.subr.bf16.mxu0 0
    %120 = vmatpush1.bf16.msra.mxu0 0
    %121 = vmatprep.subr.bf16.mxu0 0
    %122 = vmatpush1.bf16.msra.mxu0 0
    %123 = vmatprep.subr.bf16.mxu0 0
    %124 = vmatpush1.bf16.msra.mxu0 0
    %125 = vmatprep.subr.bf16.mxu0 0
    %126 = vmatpush1.bf16.msra.mxu0 0
    %127 = vmatprep.subr.bf16.mxu0 0
    %128 = vmatpush1.bf16.msra.mxu0 0
    %129 = vmatprep.mubr.bf16.mxu0 0
    %130 = vmatmul.mubr.bf16.gmra.mrb[0].mxu0 %v95
    %v131 = vpop.f32.mrb[0].mxu0
    %v132 = vadd.f32 %v74, %v131
    %v133 = vpop.f32.mrb[0].mxu0
    %v134 = vpop.f32.mrb[0].mxu0
    %v135 = vadd.f32 %v74, %v134
    %v136 = vpop.f32.mrb[0].mxu0
    %137 = vdwg.mxu0
    %v138 = vtanh.pop %v132
    %v139 = vtanh.pop %v135
    %v140 = vpack.c.bf16 %v139, %v138
    %v141 = vld [vmem:[#allocation7] sm:$0xf]
    %v142 = vld [vmem:[#allocation7 + $0x4] sm:$0xf]
    %v143 = vld [vmem:[#allocation7 + $0x8] sm:$0xf]
    %v144 = vld [vmem:[#allocation7 + $0xc] sm:$0xf]
    %v145 = vld [vmem:[#allocation7 + $0x10] sm:$0xf]
    %v146 = vld [vmem:[#allocation7 + $0x14] sm:$0xf]
    %v147 = vld [vmem:[#allocation7 + $0x18] sm:$0xf]
    %v148 = vld [vmem:[#allocation7 + $0x1c] sm:$0xf]
    %v149 = vld [vmem:[#allocation7 + $0x20] sm:$0xf]
    %v150 = vld [vmem:[#allocation7 + $0x24] sm:$0xf]
    %v151 = vld [vmem:[#allocation7 + $0x28] sm:$0xf]
    %v152 = vld [vmem:[#allocation7 + $0x2c] sm:$0xf]
    %v153 = vld [vmem:[#allocation7 + $0x30] sm:$0xf]
    %v154 = vld [vmem:[#allocation7 + $0x34] sm:$0xf]
    %v155 = vld [vmem:[#allocation7 + $0x38] sm:$0xf]
    %v156 = vld [vmem:[#allocation7 + $0x3c] sm:$0xf]
    %v157 = vld [vmem:[%s4] sm:$0x1]
    %v159 = vlaneseq
    %v160 = vshrl.u32 %v159, 7
    %v161 = vsub.s32 0, %v160
    %v162 = vrot.slane %v157, %v161
    %v180 = vunpack.c.l.b16 %v141
    %v181 = vunpack.c.l.b16 %v142
    %v182 = vunpack.c.l.b16 %v143
    %v183 = vunpack.c.l.b16 %v144
    %v184 = vunpack.c.l.b16 %v145
    %v185 = vunpack.c.l.b16 %v146
    %v186 = vunpack.c.l.b16 %v147
    %v187 = vunpack.c.l.b16 %v148
    %v188 = vunpack.c.l.b16 %v149
    %v189 = vunpack.c.l.b16 %v150
    %v190 = vunpack.c.l.b16 %v151
    %v191 = vunpack.c.l.b16 %v152
    %v192 = vunpack.c.l.b16 %v153
    %v193 = vunpack.c.l.b16 %v154
    %v194 = vunpack.c.l.b16 %v155
    %v195 = vunpack.c.l.b16 %v156
    %v196 = vpack.c.b16 %v181, %v180
    %v197 = vpack.c.b16 %v183, %v182
    %v198 = vpack.c.b16 %v185, %v184
    %v199 = vpack.c.b16 %v187, %v186
    %v200 = vpack.c.b16 %v189, %v188
    %v201 = vpack.c.b16 %v191, %v190
    %v202 = vpack.c.b16 %v193, %v192
    %v203 = vpack.c.b16 %v195, %v194
    %212 = vmatprep.subr.bf16.mxu0 0
    %213 = vmatpush1.bf16.msra.mxu0 %v196
    %214 = vmatprep.subr.bf16.mxu0 0
    %215 = vmatpush1.bf16.msra.mxu0 %v197
    %216 = vmatprep.subr.bf16.mxu0 0
    %217 = vmatpush1.bf16.msra.mxu0 %v198
    %218 = vmatprep.subr.bf16.mxu0 0
    %219 = vmatpush1.bf16.msra.mxu0 %v199
    %220 = vmatprep.subr.bf16.mxu0 0
    %221 = vmatpush1.bf16.msra.mxu0 %v200
    %222 = vmatprep.subr.bf16.mxu0 0
    %223 = vmatpush1.bf16.msra.mxu0 %v201
    %224 = vmatprep.subr.bf16.mxu0 0
    %225 = vmatpush1.bf16.msra.mxu0 %v202
    %226 = vmatprep.subr.bf16.mxu0 0
    %227 = vmatpush1.bf16.msra.mxu0 %v203
    %228 = vmatprep.subr.bf16.mxu0 0
    %229 = vmatpush1.bf16.msra.mxu0 0
    %230 = vmatprep.subr.bf16.mxu0 0
    %231 = vmatpush1.bf16.msra.mxu0 0
    %232 = vmatprep.subr.bf16.mxu0 0
    %233 = vmatpush1.bf16.msra.mxu0 0
    %234 = vmatprep.subr.bf16.mxu0 0
    %235 = vmatpush1.bf16.msra.mxu0 0
    %236 = vmatprep.subr.bf16.mxu0 0
    %237 = vmatpush1.bf16.msra.mxu0 0
    %238 = vmatprep.subr.bf16.mxu0 0
    %239 = vmatpush1.bf16.msra.mxu0 0
    %240 = vmatprep.subr.bf16.mxu0 0
    %241 = vmatpush1.bf16.msra.mxu0 0
    %242 = vmatprep.subr.bf16.mxu0 0
    %243 = vmatpush1.bf16.msra.mxu0 0
    %244 = vmatprep.mubr.bf16.mxu0 0
    %245 = vmatmul.mubr.bf16.gmra.mrb[0].mxu0 %v140
    %v246 = vpop.f32.mrb[0].mxu0
    %v247 = vadd.f32 %v162, %v246
    %v248 = vpop.f32.mrb[0].mxu0
    %v249 = vpop.f32.mrb[0].mxu0
    %v250 = vadd.f32 %v162, %v249
    %v251 = vpop.f32.mrb[0].mxu0
    %252 = vdwg.mxu0
    %253 = vst [vmem:[#allocation8] sm:$0xff] %v247
    %254 = vst [vmem:[#allocation8 + $0x8] sm:$0xff] %v250
    // Predicated region
    $region34: #{tpu_custom_call.1} parent=1 // pred_check
      _
    $region35: #{tpu_custom_call.1} parent=1 // pred_check_branch
      %256 = sbr.rel (0) target = $region37
    $region36: #{tpu_custom_call.1} parent=1 // pred_region
      %s258 = ssub.s32 256, 256
      %259 = vsyncadd [#allocation4], %s258
      %s260 = sshll.u32 [#allocation8], 4
      %s261 = int_to_ptr.vmem [resolvable:$true] %s260
      %266 = dma.vmem_to_hbm [thread:$0]  %s261, 256, %s5, [#allocation4], 128, 128, 8
    $region37: #{tpu_custom_call.1} parent=1 // pred_fallthru
      _
    // Predicated region
    $region38: #{tpu_custom_call.1} parent=1 // pred_check
      _
    $region39: #{tpu_custom_call.1} parent=1 // pred_check_branch
      %268 = sbr.rel (0) target = $region41
    $region40: #{tpu_custom_call.1} parent=1 // pred_region
      %269 = dma.done [#allocation4], 256
    $region41: #{tpu_custom_call.1} parent=1 // pred_fallthru
      _
    %270 = vsyncpa [#allocation3], 1
    %271 = vsyncpa [#allocation6], 1
    %272 = vsyncpa [#allocation4], 1

</llo_original>
